<compile_context>
chip_gen: v5e
topology: v5e:2x2
jax: 0.10.0
libtpu: 0.0.40
codegen_flags: <defaults>
</compile_context>

<pallas_src>
import math
import jax
import jax.numpy as jnp
from jax.experimental import pallas as pl
from jax.experimental.pallas import tpu as pltpu

B_LEN = 16      # fc.in_features (the "B" argument of the module)
OUT_DIM = 8     # out_dim
N_EDGES = 8     # number of edges (rows after the .view)
HIDDEN_C = 8    # Conv1d(2, 8) hidden channels


def _leaky(v):
    return jnp.where(v > 0, v, 0.1 * v)


def _gated_conv_edge_kernel(w1_ref, b1_ref, w2_ref, b2_ref,   # SMEM (flat scalars)
                            x_ref, s_ref, fcwb_ref,           # VMEM
                            o_ref):                           # VMEM out
    tn = x_ref.shape[1]
    b = x_ref.shape[2]
    hc = b1_ref.shape[0]

    xb = x_ref[...]                   # (2, TN, B)
    x0, x1 = xb[0], xb[1]             # (TN, B) each
    s = s_ref[...]                    # (B, 2B) = [prev | next] shift operators

    # One batched MXU push for all four input shifts: [x0; x1] @ [Sprev | Snext].
    xz = jnp.concatenate([x0, x1], axis=0)                       # (2TN, B)
    xs = jnp.dot(xz, s, preferred_element_type=jnp.float32)      # (2TN, 2B)
    x0p, x0n = xs[:tn, :b], xs[:tn, b:]
    x1p, x1n = xs[tn:, :b], xs[tn:, b:]

    # Hoist all scalar weight reads out of the unrolled channel loop.
    w1 = [w1_ref[i] for i in range(6 * hc)]
    b1 = [b1_ref[i] for i in range(hc)]
    w2 = [w2_ref[i] for i in range(3 * hc)]

    # conv1 (2->8, k=3, pad=1) + LeakyReLU(0.1); conv2's three k-taps are
    # accumulated separately (z0/z1/z2) so the shift is applied once AFTER the
    # loop (linearity of the shift): 2 shift ops instead of 16.
    z0 = jnp.zeros_like(x0)
    z1 = jnp.zeros_like(x0)
    z2 = jnp.zeros_like(x0)
    for c in range(hc):
        h = (w1[6 * c + 0] * x0p + w1[6 * c + 1] * x0 + w1[6 * c + 2] * x0n
             + w1[6 * c + 3] * x1p + w1[6 * c + 4] * x1 + w1[6 * c + 5] * x1n
             + b1[c])
        h = _leaky(h)
        z0 = z0 + w2[3 * c + 0] * h
        z1 = z1 + w2[3 * c + 1] * h
        z2 = z2 + w2[3 * c + 2] * h

    # One batched MXU push for the two hoisted shifts: [z0; z2] @ [Sprev | Snext].
    zz = jnp.dot(jnp.concatenate([z0, z2], axis=0), s,
                 preferred_element_type=jnp.float32)             # (2TN, 2B)
    y = _leaky(zz[:tn, :b] + z1 + zz[tn:, b:] + b2_ref[0])       # (TN, B) == .squeeze(1)

    # fc: Linear(B, out_dim); weight^T and bias live in one merged operand.
    wfc = fcwb_ref[:b, :]             # (B, out_dim)
    bfc = fcwb_ref[b:, :]             # (1, out_dim)
    o_ref[...] = jnp.dot(y, wfc, preferred_element_type=jnp.float32) + bfc


def gated_conv_edge_net(edge_attr, params, *, tile_n=512):
    """Pallas forward.  edge_attr: (N, 2*B) float32 -> (N, out_dim) float32."""
    w1, b1, w2, b2, wfc, bfc = params
    b_len = wfc.shape[1]
    out_dim = wfc.shape[0]

    x = edge_attr.reshape(-1, 2, b_len)          # == edge_attr.view(-1, 2, B)
    n = x.shape[0]

    # Tile N: whole problem in one grid step when small; 512-row tiles when big.
    if n <= tile_n:
        tn = max(8, ((n + 7) // 8) * 8)          # round up to a sublane multiple
    else:
        tn = tile_n
    grid_n = pl.cdiv(n, tn)
    n_pad = grid_n * tn

    x_cnb = jnp.transpose(x, (1, 0, 2))          # (2, N, B) channel-major
    if n_pad != n:                               # ragged last tile -> zero pad
        x_cnb = jnp.pad(x_cnb, ((0, 0), (0, n_pad - n), (0, 0)))

    # Combined shift operator: a @ S -> [a shifted by -1 | a shifted by +1],
    # zero boundary (matches Conv1d padding=1).
    s = jnp.concatenate([jnp.eye(b_len, k=1, dtype=jnp.float32),
                         jnp.eye(b_len, k=-1, dtype=jnp.float32)], axis=1)
    # fc weight^T with the bias folded in as one extra row (one fewer DMA).
    fcwb = jnp.concatenate([wfc.T.astype(jnp.float32),
                            bfc.reshape(1, out_dim).astype(jnp.float32)], axis=0)

    w1f = w1.reshape(-1)                         # (8*2*3,)
    w2f = w2.reshape(-1)                         # (1*8*3,)
    smem = pl.BlockSpec(memory_space=pltpu.MemorySpace.SMEM)

    out = pl.pallas_call(
        _gated_conv_edge_kernel,
        out_shape=jax.ShapeDtypeStruct((n_pad, out_dim), jnp.float32),
        grid=(grid_n,),
        in_specs=[
            smem, smem, smem, smem,                                  # w1, b1, w2, b2
            pl.BlockSpec((2, tn, b_len), lambda i: (0, i, 0)),       # x (2, N, B)
            pl.BlockSpec((b_len, 2 * b_len), lambda i: (0, 0)),      # [prev|next] shifts
            pl.BlockSpec((b_len + 1, out_dim), lambda i: (0, 0)),    # fc W^T + bias
        ],
        out_specs=pl.BlockSpec((tn, out_dim), lambda i: (i, 0)),
        compiler_params=pltpu.CompilerParams(
            dimension_semantics=("parallel",)),                      # edges independent
    )(w1f, b1, w2f, b2, x_cnb, s, fcwb)
    return out[:n]


def init_params(key, b_len, out_dim):
    """Deterministic init mirroring the PyTorch __init__."""
    k1, k2, k3, k4 = jax.random.split(key, 4)
    # kaiming_uniform_(nonlinearity='leaky_relu', a=0): bound = sqrt(2)*sqrt(3/fan_in)
    fan1 = 2 * 3
    bnd1 = math.sqrt(2.0) * math.sqrt(3.0 / fan1)
    w1 = jax.random.uniform(k1, (HIDDEN_C, 2, 3), jnp.float32, -bnd1, bnd1)
    b1 = jnp.zeros((HIDDEN_C,), jnp.float32)
    fan2 = HIDDEN_C * 3
    bnd2 = math.sqrt(2.0) * math.sqrt(3.0 / fan2)
    w2 = jax.random.uniform(k2, (1, HIDDEN_C, 3), jnp.float32, -bnd2, bnd2)
    b2 = jnp.zeros((1,), jnp.float32)
    # nn.Linear default init: U(-1/sqrt(in), 1/sqrt(in))
    bndf = 1.0 / math.sqrt(b_len)
    wfc = jax.random.uniform(k3, (out_dim, b_len), jnp.float32, -bndf, bndf)
    bfc = jax.random.uniform(k4, (out_dim,), jnp.float32, -bndf, bndf)
    return (w1, b1, w2, b2, wfc, bfc)


def ref_forward(edge_attr, params):
    """Pure-JAX reference of the PyTorch forward."""
    w1, b1, w2, b2, wfc, bfc = params
    b_len = wfc.shape[1]
    x = edge_attr.reshape(-1, 2, b_len)
    xp = jnp.pad(x, ((0, 0), (0, 0), (1, 1)))
    h = sum(jnp.einsum('oi,nil->nol', w1[:, :, k], xp[:, :, k:k + b_len])
            for k in range(3)) + b1[None, :, None]
    h = _leaky(h)
    hp = jnp.pad(h, ((0, 0), (0, 0), (1, 1)))
    y = sum(jnp.einsum('oi,nil->nol', w2[:, :, k], hp[:, :, k:k + b_len])
            for k in range(3)) + b2[None, :, None]
    y = _leaky(y)[:, 0, :]
    return y @ wfc.T + bfc


if __name__ == "__main__":
    key = jax.random.PRNGKey(0)
    kp, kx = jax.random.split(key)
    params = init_params(kp, B_LEN, OUT_DIM)
    edge_attr = jax.random.normal(kx, (N_EDGES, 2 * B_LEN), jnp.float32)

    out = gated_conv_edge_net(edge_attr, params)
    out = jax.block_until_ready(out)

    ref = ref_forward(edge_attr, params)
    assert out.shape == (N_EDGES, OUT_DIM)
    assert jnp.allclose(out, ref, atol=1e-3, rtol=1e-3), "mismatch vs reference"

    # Ragged-N path (cdiv + zero pad + slice) sanity check.
    edge_attr2 = jax.random.normal(jax.random.PRNGKey(1), (10, 2 * B_LEN), jnp.float32)
    out2 = jax.block_until_ready(gated_conv_edge_net(edge_attr2, params))
    ref2 = ref_forward(edge_attr2, params)
    assert out2.shape == (10, OUT_DIM)
    assert jnp.allclose(out2, ref2, atol=1e-3, rtol=1e-3), "mismatch vs reference (ragged N)"

    print("KERNEL_OK")
</pallas_src>

<mosaic_0001>
module attributes {stable_mosaic.version = 11 : i64} {
  func.func @_gated_conv_edge_kernel(%arg0: i32, %arg1: memref<48xf32, #tpu.memory_space<smem>>, %arg2: memref<8xf32, #tpu.memory_space<smem>>, %arg3: memref<24xf32, #tpu.memory_space<smem>>, %arg4: memref<1xf32, #tpu.memory_space<smem>>, %arg5: memref<2x8x16xf32, #tpu.memory_space<vmem>>, %arg6: memref<16x32xf32, #tpu.memory_space<vmem>>, %arg7: memref<17x8xf32, #tpu.memory_space<vmem>>, %arg8: memref<8x8xf32, #tpu.memory_space<vmem>>) attributes {dimension_semantics = [#tpu.dimension_semantics<parallel>], iteration_bounds = array<i64: 1>, scalar_prefetch = 0 : i64, scratch_operands = 0 : i64, tpu.core_type = #tpu.core_type<tc>, window_params = [{transform_indices = @transform_0, window_bounds = array<i64: 48>}, {transform_indices = @transform_1, window_bounds = array<i64: 8>}, {transform_indices = @transform_2, window_bounds = array<i64: 24>}, {transform_indices = @transform_3, window_bounds = array<i64: 1>}, {transform_indices = @transform_4, window_bounds = array<i64: 2, 8, 16>}, {pipeline_mode = #tpu.pipeline_mode<synchronous>, transform_indices = @transform_5, window_bounds = array<i64: 16, 32>}, {pipeline_mode = #tpu.pipeline_mode<synchronous>, transform_indices = @transform_6, window_bounds = array<i64: 17, 8>}, {transform_indices = @transform_7, window_bounds = array<i64: 8, 8>}]} {
    %c0 = arith.constant 0 : index
    %c0_0 = arith.constant 0 : index
    %c0_1 = arith.constant 0 : index
    %0 = vector.load %arg5[%c0, %c0_0, %c0_1] : memref<2x8x16xf32, #tpu.memory_space<vmem>>, vector<2x8x16xf32>
    %1 = vector.extract_strided_slice %0 {offsets = [0, 0, 0], sizes = [1, 8, 16], strides = [1, 1, 1]} : vector<2x8x16xf32> to vector<1x8x16xf32>
    %2 = vector.shape_cast %1 : vector<1x8x16xf32> to vector<8x16xf32>
    %3 = vector.extract_strided_slice %0 {offsets = [1, 0, 0], sizes = [1, 8, 16], strides = [1, 1, 1]} : vector<2x8x16xf32> to vector<1x8x16xf32>
    %4 = vector.shape_cast %3 : vector<1x8x16xf32> to vector<8x16xf32>
    %c0_2 = arith.constant 0 : index
    %c0_3 = arith.constant 0 : index
    %5 = vector.load %arg6[%c0_2, %c0_3] : memref<16x32xf32, #tpu.memory_space<vmem>>, vector<16x32xf32>
    %6 = tpu.concatenate %2, %4 in 0 : vector<8x16xf32>, vector<8x16xf32> -> vector<16x16xf32>
    %cst = arith.constant dense<0.000000e+00> : vector<16x32xf32>
    %7 = tpu.matmul %6, %5, %cst {dimension_numbers = #tpu.dot_dimension_numbers<[1], [0], [0], [1], [0, 0, 1, 1], [], []>} : vector<16x16xf32>, vector<16x32xf32>, vector<16x32xf32> -> vector<16x32xf32>
    %8 = vector.extract_strided_slice %7 {offsets = [0, 0], sizes = [8, 16], strides = [1, 1]} : vector<16x32xf32> to vector<8x16xf32>
    %9 = vector.extract_strided_slice %7 {offsets = [0, 16], sizes = [8, 16], strides = [1, 1]} : vector<16x32xf32> to vector<8x16xf32>
    %10 = vector.extract_strided_slice %7 {offsets = [8, 0], sizes = [8, 16], strides = [1, 1]} : vector<16x32xf32> to vector<8x16xf32>
    %11 = vector.extract_strided_slice %7 {offsets = [8, 16], sizes = [8, 16], strides = [1, 1]} : vector<16x32xf32> to vector<8x16xf32>
    %c0_4 = arith.constant 0 : index
    %12 = memref.load %arg1[%c0_4] : memref<48xf32, #tpu.memory_space<smem>>
    %c1 = arith.constant 1 : index
    %13 = memref.load %arg1[%c1] : memref<48xf32, #tpu.memory_space<smem>>
    %c2 = arith.constant 2 : index
    %14 = memref.load %arg1[%c2] : memref<48xf32, #tpu.memory_space<smem>>
    %c3 = arith.constant 3 : index
    %15 = memref.load %arg1[%c3] : memref<48xf32, #tpu.memory_space<smem>>
    %c4 = arith.constant 4 : index
    %16 = memref.load %arg1[%c4] : memref<48xf32, #tpu.memory_space<smem>>
    %c5 = arith.constant 5 : index
    %17 = memref.load %arg1[%c5] : memref<48xf32, #tpu.memory_space<smem>>
    %c6 = arith.constant 6 : index
    %18 = memref.load %arg1[%c6] : memref<48xf32, #tpu.memory_space<smem>>
    %c7 = arith.constant 7 : index
    %19 = memref.load %arg1[%c7] : memref<48xf32, #tpu.memory_space<smem>>
    %c8 = arith.constant 8 : index
    %20 = memref.load %arg1[%c8] : memref<48xf32, #tpu.memory_space<smem>>
    %c9 = arith.constant 9 : index
    %21 = memref.load %arg1[%c9] : memref<48xf32, #tpu.memory_space<smem>>
    %c10 = arith.constant 10 : index
    %22 = memref.load %arg1[%c10] : memref<48xf32, #tpu.memory_space<smem>>
    %c11 = arith.constant 11 : index
    %23 = memref.load %arg1[%c11] : memref<48xf32, #tpu.memory_space<smem>>
    %c12 = arith.constant 12 : index
    %24 = memref.load %arg1[%c12] : memref<48xf32, #tpu.memory_space<smem>>
    %c13 = arith.constant 13 : index
    %25 = memref.load %arg1[%c13] : memref<48xf32, #tpu.memory_space<smem>>
    %c14 = arith.constant 14 : index
    %26 = memref.load %arg1[%c14] : memref<48xf32, #tpu.memory_space<smem>>
    %c15 = arith.constant 15 : index
    %27 = memref.load %arg1[%c15] : memref<48xf32, #tpu.memory_space<smem>>
    %c16 = arith.constant 16 : index
    %28 = memref.load %arg1[%c16] : memref<48xf32, #tpu.memory_space<smem>>
    %c17 = arith.constant 17 : index
    %29 = memref.load %arg1[%c17] : memref<48xf32, #tpu.memory_space<smem>>
    %c18 = arith.constant 18 : index
    %30 = memref.load %arg1[%c18] : memref<48xf32, #tpu.memory_space<smem>>
    %c19 = arith.constant 19 : index
    %31 = memref.load %arg1[%c19] : memref<48xf32, #tpu.memory_space<smem>>
    %c20 = arith.constant 20 : index
    %32 = memref.load %arg1[%c20] : memref<48xf32, #tpu.memory_space<smem>>
    %c21 = arith.constant 21 : index
    %33 = memref.load %arg1[%c21] : memref<48xf32, #tpu.memory_space<smem>>
    %c22 = arith.constant 22 : index
    %34 = memref.load %arg1[%c22] : memref<48xf32, #tpu.memory_space<smem>>
    %c23 = arith.constant 23 : index
    %35 = memref.load %arg1[%c23] : memref<48xf32, #tpu.memory_space<smem>>
    %c24 = arith.constant 24 : index
    %36 = memref.load %arg1[%c24] : memref<48xf32, #tpu.memory_space<smem>>
    %c25 = arith.constant 25 : index
    %37 = memref.load %arg1[%c25] : memref<48xf32, #tpu.memory_space<smem>>
    %c26 = arith.constant 26 : index
    %38 = memref.load %arg1[%c26] : memref<48xf32, #tpu.memory_space<smem>>
    %c27 = arith.constant 27 : index
    %39 = memref.load %arg1[%c27] : memref<48xf32, #tpu.memory_space<smem>>
    %c28 = arith.constant 28 : index
    %40 = memref.load %arg1[%c28] : memref<48xf32, #tpu.memory_space<smem>>
    %c29 = arith.constant 29 : index
    %41 = memref.load %arg1[%c29] : memref<48xf32, #tpu.memory_space<smem>>
    %c30 = arith.constant 30 : index
    %42 = memref.load %arg1[%c30] : memref<48xf32, #tpu.memory_space<smem>>
    %c31 = arith.constant 31 : index
    %43 = memref.load %arg1[%c31] : memref<48xf32, #tpu.memory_space<smem>>
    %c32 = arith.constant 32 : index
    %44 = memref.load %arg1[%c32] : memref<48xf32, #tpu.memory_space<smem>>
    %c33 = arith.constant 33 : index
    %45 = memref.load %arg1[%c33] : memref<48xf32, #tpu.memory_space<smem>>
    %c34 = arith.constant 34 : index
    %46 = memref.load %arg1[%c34] : memref<48xf32, #tpu.memory_space<smem>>
    %c35 = arith.constant 35 : index
    %47 = memref.load %arg1[%c35] : memref<48xf32, #tpu.memory_space<smem>>
    %c36 = arith.constant 36 : index
    %48 = memref.load %arg1[%c36] : memref<48xf32, #tpu.memory_space<smem>>
    %c37 = arith.constant 37 : index
    %49 = memref.load %arg1[%c37] : memref<48xf32, #tpu.memory_space<smem>>
    %c38 = arith.constant 38 : index
    %50 = memref.load %arg1[%c38] : memref<48xf32, #tpu.memory_space<smem>>
    %c39 = arith.constant 39 : index
    %51 = memref.load %arg1[%c39] : memref<48xf32, #tpu.memory_space<smem>>
    %c40 = arith.constant 40 : index
    %52 = memref.load %arg1[%c40] : memref<48xf32, #tpu.memory_space<smem>>
    %c41 = arith.constant 41 : index
    %53 = memref.load %arg1[%c41] : memref<48xf32, #tpu.memory_space<smem>>
    %c42 = arith.constant 42 : index
    %54 = memref.load %arg1[%c42] : memref<48xf32, #tpu.memory_space<smem>>
    %c43 = arith.constant 43 : index
    %55 = memref.load %arg1[%c43] : memref<48xf32, #tpu.memory_space<smem>>
    %c44 = arith.constant 44 : index
    %56 = memref.load %arg1[%c44] : memref<48xf32, #tpu.memory_space<smem>>
    %c45 = arith.constant 45 : index
    %57 = memref.load %arg1[%c45] : memref<48xf32, #tpu.memory_space<smem>>
    %c46 = arith.constant 46 : index
    %58 = memref.load %arg1[%c46] : memref<48xf32, #tpu.memory_space<smem>>
    %c47 = arith.constant 47 : index
    %59 = memref.load %arg1[%c47] : memref<48xf32, #tpu.memory_space<smem>>
    %c0_5 = arith.constant 0 : index
    %60 = memref.load %arg2[%c0_5] : memref<8xf32, #tpu.memory_space<smem>>
    %c1_6 = arith.constant 1 : index
    %61 = memref.load %arg2[%c1_6] : memref<8xf32, #tpu.memory_space<smem>>
    %c2_7 = arith.constant 2 : index
    %62 = memref.load %arg2[%c2_7] : memref<8xf32, #tpu.memory_space<smem>>
    %c3_8 = arith.constant 3 : index
    %63 = memref.load %arg2[%c3_8] : memref<8xf32, #tpu.memory_space<smem>>
    %c4_9 = arith.constant 4 : index
    %64 = memref.load %arg2[%c4_9] : memref<8xf32, #tpu.memory_space<smem>>
    %c5_10 = arith.constant 5 : index
    %65 = memref.load %arg2[%c5_10] : memref<8xf32, #tpu.memory_space<smem>>
    %c6_11 = arith.constant 6 : index
    %66 = memref.load %arg2[%c6_11] : memref<8xf32, #tpu.memory_space<smem>>
    %c7_12 = arith.constant 7 : index
    %67 = memref.load %arg2[%c7_12] : memref<8xf32, #tpu.memory_space<smem>>
    %c0_13 = arith.constant 0 : index
    %68 = memref.load %arg3[%c0_13] : memref<24xf32, #tpu.memory_space<smem>>
    %c1_14 = arith.constant 1 : index
    %69 = memref.load %arg3[%c1_14] : memref<24xf32, #tpu.memory_space<smem>>
    %c2_15 = arith.constant 2 : index
    %70 = memref.load %arg3[%c2_15] : memref<24xf32, #tpu.memory_space<smem>>
    %c3_16 = arith.constant 3 : index
    %71 = memref.load %arg3[%c3_16] : memref<24xf32, #tpu.memory_space<smem>>
    %c4_17 = arith.constant 4 : index
    %72 = memref.load %arg3[%c4_17] : memref<24xf32, #tpu.memory_space<smem>>
    %c5_18 = arith.constant 5 : index
    %73 = memref.load %arg3[%c5_18] : memref<24xf32, #tpu.memory_space<smem>>
    %c6_19 = arith.constant 6 : index
    %74 = memref.load %arg3[%c6_19] : memref<24xf32, #tpu.memory_space<smem>>
    %c7_20 = arith.constant 7 : index
    %75 = memref.load %arg3[%c7_20] : memref<24xf32, #tpu.memory_space<smem>>
    %c8_21 = arith.constant 8 : index
    %76 = memref.load %arg3[%c8_21] : memref<24xf32, #tpu.memory_space<smem>>
    %c9_22 = arith.constant 9 : index
    %77 = memref.load %arg3[%c9_22] : memref<24xf32, #tpu.memory_space<smem>>
    %c10_23 = arith.constant 10 : index
    %78 = memref.load %arg3[%c10_23] : memref<24xf32, #tpu.memory_space<smem>>
    %c11_24 = arith.constant 11 : index
    %79 = memref.load %arg3[%c11_24] : memref<24xf32, #tpu.memory_space<smem>>
    %c12_25 = arith.constant 12 : index
    %80 = memref.load %arg3[%c12_25] : memref<24xf32, #tpu.memory_space<smem>>
    %c13_26 = arith.constant 13 : index
    %81 = memref.load %arg3[%c13_26] : memref<24xf32, #tpu.memory_space<smem>>
    %c14_27 = arith.constant 14 : index
    %82 = memref.load %arg3[%c14_27] : memref<24xf32, #tpu.memory_space<smem>>
    %c15_28 = arith.constant 15 : index
    %83 = memref.load %arg3[%c15_28] : memref<24xf32, #tpu.memory_space<smem>>
    %c16_29 = arith.constant 16 : index
    %84 = memref.load %arg3[%c16_29] : memref<24xf32, #tpu.memory_space<smem>>
    %c17_30 = arith.constant 17 : index
    %85 = memref.load %arg3[%c17_30] : memref<24xf32, #tpu.memory_space<smem>>
    %c18_31 = arith.constant 18 : index
    %86 = memref.load %arg3[%c18_31] : memref<24xf32, #tpu.memory_space<smem>>
    %c19_32 = arith.constant 19 : index
    %87 = memref.load %arg3[%c19_32] : memref<24xf32, #tpu.memory_space<smem>>
    %c20_33 = arith.constant 20 : index
    %88 = memref.load %arg3[%c20_33] : memref<24xf32, #tpu.memory_space<smem>>
    %c21_34 = arith.constant 21 : index
    %89 = memref.load %arg3[%c21_34] : memref<24xf32, #tpu.memory_space<smem>>
    %c22_35 = arith.constant 22 : index
    %90 = memref.load %arg3[%c22_35] : memref<24xf32, #tpu.memory_space<smem>>
    %c23_36 = arith.constant 23 : index
    %91 = memref.load %arg3[%c23_36] : memref<24xf32, #tpu.memory_space<smem>>
    %cst_37 = arith.constant 0.000000e+00 : f32
    %92 = vector.broadcast %cst_37 : f32 to vector<8x16xf32>
    %cst_38 = arith.constant 0.000000e+00 : f32
    %93 = vector.broadcast %cst_38 : f32 to vector<8x16xf32>
    %cst_39 = arith.constant 0.000000e+00 : f32
    %94 = vector.broadcast %cst_39 : f32 to vector<8x16xf32>
    %95 = vector.broadcast %12 : f32 to vector<8x16xf32>
    %96 = arith.mulf %95, %8 : vector<8x16xf32>
    %97 = vector.broadcast %13 : f32 to vector<8x16xf32>
    %98 = arith.mulf %97, %2 : vector<8x16xf32>
    %99 = arith.addf %96, %98 : vector<8x16xf32>
    %100 = vector.broadcast %14 : f32 to vector<8x16xf32>
    %101 = arith.mulf %100, %9 : vector<8x16xf32>
    %102 = arith.addf %99, %101 : vector<8x16xf32>
    %103 = vector.broadcast %15 : f32 to vector<8x16xf32>
    %104 = arith.mulf %103, %10 : vector<8x16xf32>
    %105 = arith.addf %102, %104 : vector<8x16xf32>
    %106 = vector.broadcast %16 : f32 to vector<8x16xf32>
    %107 = arith.mulf %106, %4 : vector<8x16xf32>
    %108 = arith.addf %105, %107 : vector<8x16xf32>
    %109 = vector.broadcast %17 : f32 to vector<8x16xf32>
    %110 = arith.mulf %109, %11 : vector<8x16xf32>
    %111 = arith.addf %108, %110 : vector<8x16xf32>
    %112 = vector.broadcast %60 : f32 to vector<8x16xf32>
    %113 = arith.addf %111, %112 : vector<8x16xf32>
    %cst_40 = arith.constant 0.000000e+00 : f32
    %114 = vector.broadcast %cst_40 : f32 to vector<8x16xf32>
    %115 = arith.cmpf ogt, %113, %114 : vector<8x16xf32>
    %cst_41 = arith.constant 1.000000e-01 : f32
    %116 = vector.broadcast %cst_41 : f32 to vector<8x16xf32>
    %117 = arith.mulf %116, %113 : vector<8x16xf32>
    %118 = arith.select %115, %113, %117 : vector<8x16xi1>, vector<8x16xf32>
    %119 = vector.broadcast %68 : f32 to vector<8x16xf32>
    %120 = arith.mulf %119, %118 : vector<8x16xf32>
    %121 = arith.addf %92, %120 : vector<8x16xf32>
    %122 = vector.broadcast %69 : f32 to vector<8x16xf32>
    %123 = arith.mulf %122, %118 : vector<8x16xf32>
    %124 = arith.addf %93, %123 : vector<8x16xf32>
    %125 = vector.broadcast %70 : f32 to vector<8x16xf32>
    %126 = arith.mulf %125, %118 : vector<8x16xf32>
    %127 = arith.addf %94, %126 : vector<8x16xf32>
    %128 = vector.broadcast %18 : f32 to vector<8x16xf32>
    %129 = arith.mulf %128, %8 : vector<8x16xf32>
    %130 = vector.broadcast %19 : f32 to vector<8x16xf32>
    %131 = arith.mulf %130, %2 : vector<8x16xf32>
    %132 = arith.addf %129, %131 : vector<8x16xf32>
    %133 = vector.broadcast %20 : f32 to vector<8x16xf32>
    %134 = arith.mulf %133, %9 : vector<8x16xf32>
    %135 = arith.addf %132, %134 : vector<8x16xf32>
    %136 = vector.broadcast %21 : f32 to vector<8x16xf32>
    %137 = arith.mulf %136, %10 : vector<8x16xf32>
    %138 = arith.addf %135, %137 : vector<8x16xf32>
    %139 = vector.broadcast %22 : f32 to vector<8x16xf32>
    %140 = arith.mulf %139, %4 : vector<8x16xf32>
    %141 = arith.addf %138, %140 : vector<8x16xf32>
    %142 = vector.broadcast %23 : f32 to vector<8x16xf32>
    %143 = arith.mulf %142, %11 : vector<8x16xf32>
    %144 = arith.addf %141, %143 : vector<8x16xf32>
    %145 = vector.broadcast %61 : f32 to vector<8x16xf32>
    %146 = arith.addf %144, %145 : vector<8x16xf32>
    %cst_42 = arith.constant 0.000000e+00 : f32
    %147 = vector.broadcast %cst_42 : f32 to vector<8x16xf32>
    %148 = arith.cmpf ogt, %146, %147 : vector<8x16xf32>
    %cst_43 = arith.constant 1.000000e-01 : f32
    %149 = vector.broadcast %cst_43 : f32 to vector<8x16xf32>
    %150 = arith.mulf %149, %146 : vector<8x16xf32>
    %151 = arith.select %148, %146, %150 : vector<8x16xi1>, vector<8x16xf32>
    %152 = vector.broadcast %71 : f32 to vector<8x16xf32>
    %153 = arith.mulf %152, %151 : vector<8x16xf32>
    %154 = arith.addf %121, %153 : vector<8x16xf32>
    %155 = vector.broadcast %72 : f32 to vector<8x16xf32>
    %156 = arith.mulf %155, %151 : vector<8x16xf32>
    %157 = arith.addf %124, %156 : vector<8x16xf32>
    %158 = vector.broadcast %73 : f32 to vector<8x16xf32>
    %159 = arith.mulf %158, %151 : vector<8x16xf32>
    %160 = arith.addf %127, %159 : vector<8x16xf32>
    %161 = vector.broadcast %24 : f32 to vector<8x16xf32>
    %162 = arith.mulf %161, %8 : vector<8x16xf32>
    %163 = vector.broadcast %25 : f32 to vector<8x16xf32>
    %164 = arith.mulf %163, %2 : vector<8x16xf32>
    %165 = arith.addf %162, %164 : vector<8x16xf32>
    %166 = vector.broadcast %26 : f32 to vector<8x16xf32>
    %167 = arith.mulf %166, %9 : vector<8x16xf32>
    %168 = arith.addf %165, %167 : vector<8x16xf32>
    %169 = vector.broadcast %27 : f32 to vector<8x16xf32>
    %170 = arith.mulf %169, %10 : vector<8x16xf32>
    %171 = arith.addf %168, %170 : vector<8x16xf32>
    %172 = vector.broadcast %28 : f32 to vector<8x16xf32>
    %173 = arith.mulf %172, %4 : vector<8x16xf32>
    %174 = arith.addf %171, %173 : vector<8x16xf32>
    %175 = vector.broadcast %29 : f32 to vector<8x16xf32>
    %176 = arith.mulf %175, %11 : vector<8x16xf32>
    %177 = arith.addf %174, %176 : vector<8x16xf32>
    %178 = vector.broadcast %62 : f32 to vector<8x16xf32>
    %179 = arith.addf %177, %178 : vector<8x16xf32>
    %cst_44 = arith.constant 0.000000e+00 : f32
    %180 = vector.broadcast %cst_44 : f32 to vector<8x16xf32>
    %181 = arith.cmpf ogt, %179, %180 : vector<8x16xf32>
    %cst_45 = arith.constant 1.000000e-01 : f32
    %182 = vector.broadcast %cst_45 : f32 to vector<8x16xf32>
    %183 = arith.mulf %182, %179 : vector<8x16xf32>
    %184 = arith.select %181, %179, %183 : vector<8x16xi1>, vector<8x16xf32>
    %185 = vector.broadcast %74 : f32 to vector<8x16xf32>
    %186 = arith.mulf %185, %184 : vector<8x16xf32>
    %187 = arith.addf %154, %186 : vector<8x16xf32>
    %188 = vector.broadcast %75 : f32 to vector<8x16xf32>
    %189 = arith.mulf %188, %184 : vector<8x16xf32>
    %190 = arith.addf %157, %189 : vector<8x16xf32>
    %191 = vector.broadcast %76 : f32 to vector<8x16xf32>
    %192 = arith.mulf %191, %184 : vector<8x16xf32>
    %193 = arith.addf %160, %192 : vector<8x16xf32>
    %194 = vector.broadcast %30 : f32 to vector<8x16xf32>
    %195 = arith.mulf %194, %8 : vector<8x16xf32>
    %196 = vector.broadcast %31 : f32 to vector<8x16xf32>
    %197 = arith.mulf %196, %2 : vector<8x16xf32>
    %198 = arith.addf %195, %197 : vector<8x16xf32>
    %199 = vector.broadcast %32 : f32 to vector<8x16xf32>
    %200 = arith.mulf %199, %9 : vector<8x16xf32>
    %201 = arith.addf %198, %200 : vector<8x16xf32>
    %202 = vector.broadcast %33 : f32 to vector<8x16xf32>
    %203 = arith.mulf %202, %10 : vector<8x16xf32>
    %204 = arith.addf %201, %203 : vector<8x16xf32>
    %205 = vector.broadcast %34 : f32 to vector<8x16xf32>
    %206 = arith.mulf %205, %4 : vector<8x16xf32>
    %207 = arith.addf %204, %206 : vector<8x16xf32>
    %208 = vector.broadcast %35 : f32 to vector<8x16xf32>
    %209 = arith.mulf %208, %11 : vector<8x16xf32>
    %210 = arith.addf %207, %209 : vector<8x16xf32>
    %211 = vector.broadcast %63 : f32 to vector<8x16xf32>
    %212 = arith.addf %210, %211 : vector<8x16xf32>
    %cst_46 = arith.constant 0.000000e+00 : f32
    %213 = vector.broadcast %cst_46 : f32 to vector<8x16xf32>
    %214 = arith.cmpf ogt, %212, %213 : vector<8x16xf32>
    %cst_47 = arith.constant 1.000000e-01 : f32
    %215 = vector.broadcast %cst_47 : f32 to vector<8x16xf32>
    %216 = arith.mulf %215, %212 : vector<8x16xf32>
    %217 = arith.select %214, %212, %216 : vector<8x16xi1>, vector<8x16xf32>
    %218 = vector.broadcast %77 : f32 to vector<8x16xf32>
    %219 = arith.mulf %218, %217 : vector<8x16xf32>
    %220 = arith.addf %187, %219 : vector<8x16xf32>
    %221 = vector.broadcast %78 : f32 to vector<8x16xf32>
    %222 = arith.mulf %221, %217 : vector<8x16xf32>
    %223 = arith.addf %190, %222 : vector<8x16xf32>
    %224 = vector.broadcast %79 : f32 to vector<8x16xf32>
    %225 = arith.mulf %224, %217 : vector<8x16xf32>
    %226 = arith.addf %193, %225 : vector<8x16xf32>
    %227 = vector.broadcast %36 : f32 to vector<8x16xf32>
    %228 = arith.mulf %227, %8 : vector<8x16xf32>
    %229 = vector.broadcast %37 : f32 to vector<8x16xf32>
    %230 = arith.mulf %229, %2 : vector<8x16xf32>
    %231 = arith.addf %228, %230 : vector<8x16xf32>
    %232 = vector.broadcast %38 : f32 to vector<8x16xf32>
    %233 = arith.mulf %232, %9 : vector<8x16xf32>
    %234 = arith.addf %231, %233 : vector<8x16xf32>
    %235 = vector.broadcast %39 : f32 to vector<8x16xf32>
    %236 = arith.mulf %235, %10 : vector<8x16xf32>
    %237 = arith.addf %234, %236 : vector<8x16xf32>
    %238 = vector.broadcast %40 : f32 to vector<8x16xf32>
    %239 = arith.mulf %238, %4 : vector<8x16xf32>
    %240 = arith.addf %237, %239 : vector<8x16xf32>
    %241 = vector.broadcast %41 : f32 to vector<8x16xf32>
    %242 = arith.mulf %241, %11 : vector<8x16xf32>
    %243 = arith.addf %240, %242 : vector<8x16xf32>
    %244 = vector.broadcast %64 : f32 to vector<8x16xf32>
    %245 = arith.addf %243, %244 : vector<8x16xf32>
    %cst_48 = arith.constant 0.000000e+00 : f32
    %246 = vector.broadcast %cst_48 : f32 to vector<8x16xf32>
    %247 = arith.cmpf ogt, %245, %246 : vector<8x16xf32>
    %cst_49 = arith.constant 1.000000e-01 : f32
    %248 = vector.broadcast %cst_49 : f32 to vector<8x16xf32>
    %249 = arith.mulf %248, %245 : vector<8x16xf32>
    %250 = arith.select %247, %245, %249 : vector<8x16xi1>, vector<8x16xf32>
    %251 = vector.broadcast %80 : f32 to vector<8x16xf32>
    %252 = arith.mulf %251, %250 : vector<8x16xf32>
    %253 = arith.addf %220, %252 : vector<8x16xf32>
    %254 = vector.broadcast %81 : f32 to vector<8x16xf32>
    %255 = arith.mulf %254, %250 : vector<8x16xf32>
    %256 = arith.addf %223, %255 : vector<8x16xf32>
    %257 = vector.broadcast %82 : f32 to vector<8x16xf32>
    %258 = arith.mulf %257, %250 : vector<8x16xf32>
    %259 = arith.addf %226, %258 : vector<8x16xf32>
    %260 = vector.broadcast %42 : f32 to vector<8x16xf32>
    %261 = arith.mulf %260, %8 : vector<8x16xf32>
    %262 = vector.broadcast %43 : f32 to vector<8x16xf32>
    %263 = arith.mulf %262, %2 : vector<8x16xf32>
    %264 = arith.addf %261, %263 : vector<8x16xf32>
    %265 = vector.broadcast %44 : f32 to vector<8x16xf32>
    %266 = arith.mulf %265, %9 : vector<8x16xf32>
    %267 = arith.addf %264, %266 : vector<8x16xf32>
    %268 = vector.broadcast %45 : f32 to vector<8x16xf32>
    %269 = arith.mulf %268, %10 : vector<8x16xf32>
    %270 = arith.addf %267, %269 : vector<8x16xf32>
    %271 = vector.broadcast %46 : f32 to vector<8x16xf32>
    %272 = arith.mulf %271, %4 : vector<8x16xf32>
    %273 = arith.addf %270, %272 : vector<8x16xf32>
    %274 = vector.broadcast %47 : f32 to vector<8x16xf32>
    %275 = arith.mulf %274, %11 : vector<8x16xf32>
    %276 = arith.addf %273, %275 : vector<8x16xf32>
    %277 = vector.broadcast %65 : f32 to vector<8x16xf32>
    %278 = arith.addf %276, %277 : vector<8x16xf32>
    %cst_50 = arith.constant 0.000000e+00 : f32
    %279 = vector.broadcast %cst_50 : f32 to vector<8x16xf32>
    %280 = arith.cmpf ogt, %278, %279 : vector<8x16xf32>
    %cst_51 = arith.constant 1.000000e-01 : f32
    %281 = vector.broadcast %cst_51 : f32 to vector<8x16xf32>
    %282 = arith.mulf %281, %278 : vector<8x16xf32>
    %283 = arith.select %280, %278, %282 : vector<8x16xi1>, vector<8x16xf32>
    %284 = vector.broadcast %83 : f32 to vector<8x16xf32>
    %285 = arith.mulf %284, %283 : vector<8x16xf32>
    %286 = arith.addf %253, %285 : vector<8x16xf32>
    %287 = vector.broadcast %84 : f32 to vector<8x16xf32>
    %288 = arith.mulf %287, %283 : vector<8x16xf32>
    %289 = arith.addf %256, %288 : vector<8x16xf32>
    %290 = vector.broadcast %85 : f32 to vector<8x16xf32>
    %291 = arith.mulf %290, %283 : vector<8x16xf32>
    %292 = arith.addf %259, %291 : vector<8x16xf32>
    %293 = vector.broadcast %48 : f32 to vector<8x16xf32>
    %294 = arith.mulf %293, %8 : vector<8x16xf32>
    %295 = vector.broadcast %49 : f32 to vector<8x16xf32>
    %296 = arith.mulf %295, %2 : vector<8x16xf32>
    %297 = arith.addf %294, %296 : vector<8x16xf32>
    %298 = vector.broadcast %50 : f32 to vector<8x16xf32>
    %299 = arith.mulf %298, %9 : vector<8x16xf32>
    %300 = arith.addf %297, %299 : vector<8x16xf32>
    %301 = vector.broadcast %51 : f32 to vector<8x16xf32>
    %302 = arith.mulf %301, %10 : vector<8x16xf32>
    %303 = arith.addf %300, %302 : vector<8x16xf32>
    %304 = vector.broadcast %52 : f32 to vector<8x16xf32>
    %305 = arith.mulf %304, %4 : vector<8x16xf32>
    %306 = arith.addf %303, %305 : vector<8x16xf32>
    %307 = vector.broadcast %53 : f32 to vector<8x16xf32>
    %308 = arith.mulf %307, %11 : vector<8x16xf32>
    %309 = arith.addf %306, %308 : vector<8x16xf32>
    %310 = vector.broadcast %66 : f32 to vector<8x16xf32>
    %311 = arith.addf %309, %310 : vector<8x16xf32>
    %cst_52 = arith.constant 0.000000e+00 : f32
    %312 = vector.broadcast %cst_52 : f32 to vector<8x16xf32>
    %313 = arith.cmpf ogt, %311, %312 : vector<8x16xf32>
    %cst_53 = arith.constant 1.000000e-01 : f32
    %314 = vector.broadcast %cst_53 : f32 to vector<8x16xf32>
    %315 = arith.mulf %314, %311 : vector<8x16xf32>
    %316 = arith.select %313, %311, %315 : vector<8x16xi1>, vector<8x16xf32>
    %317 = vector.broadcast %86 : f32 to vector<8x16xf32>
    %318 = arith.mulf %317, %316 : vector<8x16xf32>
    %319 = arith.addf %286, %318 : vector<8x16xf32>
    %320 = vector.broadcast %87 : f32 to vector<8x16xf32>
    %321 = arith.mulf %320, %316 : vector<8x16xf32>
    %322 = arith.addf %289, %321 : vector<8x16xf32>
    %323 = vector.broadcast %88 : f32 to vector<8x16xf32>
    %324 = arith.mulf %323, %316 : vector<8x16xf32>
    %325 = arith.addf %292, %324 : vector<8x16xf32>
    %326 = vector.broadcast %54 : f32 to vector<8x16xf32>
    %327 = arith.mulf %326, %8 : vector<8x16xf32>
    %328 = vector.broadcast %55 : f32 to vector<8x16xf32>
    %329 = arith.mulf %328, %2 : vector<8x16xf32>
    %330 = arith.addf %327, %329 : vector<8x16xf32>
    %331 = vector.broadcast %56 : f32 to vector<8x16xf32>
    %332 = arith.mulf %331, %9 : vector<8x16xf32>
    %333 = arith.addf %330, %332 : vector<8x16xf32>
    %334 = vector.broadcast %57 : f32 to vector<8x16xf32>
    %335 = arith.mulf %334, %10 : vector<8x16xf32>
    %336 = arith.addf %333, %335 : vector<8x16xf32>
    %337 = vector.broadcast %58 : f32 to vector<8x16xf32>
    %338 = arith.mulf %337, %4 : vector<8x16xf32>
    %339 = arith.addf %336, %338 : vector<8x16xf32>
    %340 = vector.broadcast %59 : f32 to vector<8x16xf32>
    %341 = arith.mulf %340, %11 : vector<8x16xf32>
    %342 = arith.addf %339, %341 : vector<8x16xf32>
    %343 = vector.broadcast %67 : f32 to vector<8x16xf32>
    %344 = arith.addf %342, %343 : vector<8x16xf32>
    %cst_54 = arith.constant 0.000000e+00 : f32
    %345 = vector.broadcast %cst_54 : f32 to vector<8x16xf32>
    %346 = arith.cmpf ogt, %344, %345 : vector<8x16xf32>
    %cst_55 = arith.constant 1.000000e-01 : f32
    %347 = vector.broadcast %cst_55 : f32 to vector<8x16xf32>
    %348 = arith.mulf %347, %344 : vector<8x16xf32>
    %349 = arith.select %346, %344, %348 : vector<8x16xi1>, vector<8x16xf32>
    %350 = vector.broadcast %89 : f32 to vector<8x16xf32>
    %351 = arith.mulf %350, %349 : vector<8x16xf32>
    %352 = arith.addf %319, %351 : vector<8x16xf32>
    %353 = vector.broadcast %90 : f32 to vector<8x16xf32>
    %354 = arith.mulf %353, %349 : vector<8x16xf32>
    %355 = arith.addf %322, %354 : vector<8x16xf32>
    %356 = vector.broadcast %91 : f32 to vector<8x16xf32>
    %357 = arith.mulf %356, %349 : vector<8x16xf32>
    %358 = arith.addf %325, %357 : vector<8x16xf32>
    %359 = tpu.concatenate %352, %358 in 0 : vector<8x16xf32>, vector<8x16xf32> -> vector<16x16xf32>
    %cst_56 = arith.constant dense<0.000000e+00> : vector<16x32xf32>
    %360 = tpu.matmul %359, %5, %cst_56 {dimension_numbers = #tpu.dot_dimension_numbers<[1], [0], [0], [1], [0, 0, 1, 1], [], []>} : vector<16x16xf32>, vector<16x32xf32>, vector<16x32xf32> -> vector<16x32xf32>
    %361 = vector.extract_strided_slice %360 {offsets = [0, 0], sizes = [8, 16], strides = [1, 1]} : vector<16x32xf32> to vector<8x16xf32>
    %362 = arith.addf %361, %355 : vector<8x16xf32>
    %363 = vector.extract_strided_slice %360 {offsets = [8, 16], sizes = [8, 16], strides = [1, 1]} : vector<16x32xf32> to vector<8x16xf32>
    %364 = arith.addf %362, %363 : vector<8x16xf32>
    %c0_57 = arith.constant 0 : index
    %365 = memref.load %arg4[%c0_57] : memref<1xf32, #tpu.memory_space<smem>>
    %366 = vector.broadcast %365 : f32 to vector<8x16xf32>
    %367 = arith.addf %364, %366 : vector<8x16xf32>
    %cst_58 = arith.constant 0.000000e+00 : f32
    %368 = vector.broadcast %cst_58 : f32 to vector<8x16xf32>
    %369 = arith.cmpf ogt, %367, %368 : vector<8x16xf32>
    %cst_59 = arith.constant 1.000000e-01 : f32
    %370 = vector.broadcast %cst_59 : f32 to vector<8x16xf32>
    %371 = arith.mulf %370, %367 : vector<8x16xf32>
    %372 = arith.select %369, %367, %371 : vector<8x16xi1>, vector<8x16xf32>
    %c0_60 = arith.constant 0 : index
    %c0_61 = arith.constant 0 : index
    %373 = vector.load %arg7[%c0_60, %c0_61] : memref<17x8xf32, #tpu.memory_space<vmem>>, vector<16x8xf32>
    %c16_62 = arith.constant 16 : index
    %c0_63 = arith.constant 0 : index
    %374 = vector.load %arg7[%c16_62, %c0_63] : memref<17x8xf32, #tpu.memory_space<vmem>>, vector<1x8xf32>
    %cst_64 = arith.constant dense<0.000000e+00> : vector<8x8xf32>
    %375 = tpu.matmul %372, %373, %cst_64 {dimension_numbers = #tpu.dot_dimension_numbers<[1], [0], [0], [1], [0, 0, 1, 1], [], []>} : vector<8x16xf32>, vector<16x8xf32>, vector<8x8xf32> -> vector<8x8xf32>
    %376 = vector.broadcast %374 : vector<1x8xf32> to vector<8x8xf32>
    %377 = arith.addf %375, %376 : vector<8x8xf32>
    %c0_65 = arith.constant 0 : index
    %c0_66 = arith.constant 0 : index
    %378 = vector.load %arg8[%c0_65, %c0_66] : memref<8x8xf32, #tpu.memory_space<vmem>>, vector<8x8xf32>
    tpu.vector_store %arg8[%c0_65, %c0_66], %377 {strides = array<i32>} : memref<8x8xf32, #tpu.memory_space<vmem>>, vector<8x8xf32>,
    return
  }
  func.func @transform_0(%arg0: i32) -> i32 {
    %c0_i32 = arith.constant 0 : i32
    %c0_i32_0 = arith.constant 0 : i32
    return %c0_i32 : i32
  }
  func.func @transform_1(%arg0: i32) -> i32 {
    %c0_i32 = arith.constant 0 : i32
    %c0_i32_0 = arith.constant 0 : i32
    return %c0_i32 : i32
  }
  func.func @transform_2(%arg0: i32) -> i32 {
    %c0_i32 = arith.constant 0 : i32
    %c0_i32_0 = arith.constant 0 : i32
    return %c0_i32 : i32
  }
  func.func @transform_3(%arg0: i32) -> i32 {
    %c0_i32 = arith.constant 0 : i32
    %c0_i32_0 = arith.constant 0 : i32
    return %c0_i32 : i32
  }
  func.func @transform_4(%arg0: i32) -> (i32, i32, i32) {
    %c0_i32 = arith.constant 0 : i32
    %c0_i32_0 = arith.constant 0 : i32
    %c0_i32_1 = arith.constant 0 : i32
    return %c0_i32, %arg0, %c0_i32_0 : i32, i32, i32
  }
  func.func @transform_5(%arg0: i32) -> (i32, i32) {
    %c0_i32 = arith.constant 0 : i32
    %c0_i32_0 = arith.constant 0 : i32
    %c0_i32_1 = arith.constant 0 : i32
    return %c0_i32, %c0_i32_0 : i32, i32
  }
  func.func @transform_6(%arg0: i32) -> (i32, i32) {
    %c0_i32 = arith.constant 0 : i32
    %c0_i32_0 = arith.constant 0 : i32
    %c0_i32_1 = arith.constant 0 : i32
    return %c0_i32, %c0_i32_0 : i32, i32
  }
  func.func @transform_7(%arg0: i32) -> (i32, i32) {
    %c0_i32 = arith.constant 0 : i32
    %c0_i32_0 = arith.constant 0 : i32
    return %arg0, %c0_i32 : i32, i32
  }
}

</mosaic_0001>

<llo_original>
// kernel: tpu_custom_call.1
$region0: #{tpu_custom_call.1}
  #allocation0 [shape = 'u32[]', space=smem, size = 0x4, offset = 0x4, fixed_abs, tag = 'smem constant byte address 0x4 - core index']
  #allocation1 [shape = 'u32[72,128]{1,0:T(1,128)}', space=vmem, size = 0x9000, scoped, tag = 'internal scratch']
  #allocation2 [shape = 'f32[1]{0:T(128)S(6)}', space=smem, size = 0x200, scoped, tag = 'scoped memory for tpu_custom_call.1']
  %s0 = inlined_call_operand.vmem [shape: f32[48], index: 0, kind: input, shape index: {}]
  %s1 = inlined_call_operand.vmem [shape: f32[8], index: 1, kind: input, shape index: {}]
  %s2 = inlined_call_operand.vmem [shape: f32[24], index: 2, kind: input, shape index: {}]
  %s3 = inlined_call_operand.<no memory space> [shape: f32[1], index: 3, kind: input, shape index: {}]
  %s4 = inlined_call_operand.vmem [shape: f32[2,8,16], index: 4, kind: input, shape index: {}]
  %s5 = inlined_call_operand.vmem [shape: f32[16,32], index: 5, kind: input, shape index: {}]
  %s6 = inlined_call_operand.vmem [shape: f32[17,8], index: 6, kind: input, shape index: {}]
  %s7 = inlined_call_operand.hbm [shape: f32[8,8], index: 7, kind: output, shape index: {}]
  %s8 = sld [smem:[#allocation0]]
  $region50: #{tpu_custom_call.1} parent=0
    _
  %s10 = ssub.s32 1, %s8
  %s11 = scalar_select 0, %s10, %s8
  %12 = sst [smem:[#allocation2]] %s3
  $region1: #{tpu_custom_call.1} parent=0
    #allocation3 [shape = 'u8[512]{0}', space=smem, size = 0x200, scoped, tag = 'input window, operand 0, single buffered']
    #allocation4 [shape = 's32[1]{0}', space=sflag, size = 0x4, scoped, tag = 'scoped memory for tpu_custom_call.1']
    #allocation5 [shape = 's32[1]{0}', space=sflag, size = 0x4, scoped, tag = 'scoped memory for tpu_custom_call.1']
    #allocation6 [shape = 'u8[512]{0}', space=smem, size = 0x200, scoped, tag = 'input window, operand 1, single buffered']
    #allocation7 [shape = 's32[1]{0}', space=sflag, size = 0x4, scoped, tag = 'scoped memory for tpu_custom_call.1']
    #allocation8 [shape = 'u8[512]{0}', space=smem, size = 0x200, scoped, tag = 'input window, operand 2, single buffered']
    #allocation9 [shape = 'u8[4096]{0}', space=vmem, size = 0x1000, scoped, tag = 'output window, operand 0, single buffered']
    %13 = vsyncpa [#allocation5], 0
    %14 = vsyncpa [#allocation7], 0
    %15 = vsyncpa [#allocation4], 0
    // Predicated region
    $region2: #{tpu_custom_call.1} parent=1 // pred_check
      _
    $region3: #{tpu_custom_call.1} parent=1 // pred_check_branch
      %17 = sbr.rel (0) target = $region5
    $region4: #{tpu_custom_call.1} parent=1 // pred_region
      %19 = vsyncadd [#allocation5], 0
      %s21 = sshll.u32 %s0, 4
      %s22 = int_to_ptr.vmem [resolvable:$true] %s21
      %24 = dma.vmem_to_smem %s22, 16, [#allocation3], [#allocation5]
    $region5: #{tpu_custom_call.1} parent=1 // pred_fallthru
      _
    // Predicated region
    $region6: #{tpu_custom_call.1} parent=1 // pred_check
      _
    $region7: #{tpu_custom_call.1} parent=1 // pred_check_branch
      %26 = sbr.rel (0) target = $region9
    $region8: #{tpu_custom_call.1} parent=1 // pred_region
      %28 = vsyncadd [#allocation7], 0
      %s30 = sshll.u32 %s1, 4
      %s31 = int_to_ptr.vmem [resolvable:$true] %s30
      %33 = dma.vmem_to_smem %s31, 16, [#allocation6], [#allocation7]
    $region9: #{tpu_custom_call.1} parent=1 // pred_fallthru
      _
    // Predicated region
    $region10: #{tpu_custom_call.1} parent=1 // pred_check
      _
    $region11: #{tpu_custom_call.1} parent=1 // pred_check_branch
      %35 = sbr.rel (0) target = $region13
    $region12: #{tpu_custom_call.1} parent=1 // pred_region
      %37 = vsyncadd [#allocation7], 0
      %s39 = sshll.u32 %s2, 4
      %s40 = int_to_ptr.vmem [resolvable:$true] %s39
      %42 = dma.vmem_to_smem %s40, 16, [#allocation8], [#allocation7]
    $region13: #{tpu_custom_call.1} parent=1 // pred_fallthru
      _
    // Predicated region
    $region14: #{tpu_custom_call.1} parent=1 // pred_check
      _
    $region15: #{tpu_custom_call.1} parent=1 // pred_check_branch
      %44 = sbr.rel (0) target = $region17
    $region16: #{tpu_custom_call.1} parent=1 // pred_region
      _
    $region17: #{tpu_custom_call.1} parent=1 // pred_fallthru
      _
    // Predicated region
    $region18: #{tpu_custom_call.1} parent=1 // pred_check
      _
    $region19: #{tpu_custom_call.1} parent=1 // pred_check_branch
      %46 = sbr.rel (0) target = $region21
    $region20: #{tpu_custom_call.1} parent=1 // pred_region
      _
    $region21: #{tpu_custom_call.1} parent=1 // pred_fallthru
      _
    // Predicated region
    $region22: #{tpu_custom_call.1} parent=1 // pred_check
      _
    $region23: #{tpu_custom_call.1} parent=1 // pred_check_branch
      %48 = sbr.rel (0) target = $region25
    $region24: #{tpu_custom_call.1} parent=1 // pred_region
      _
    $region25: #{tpu_custom_call.1} parent=1 // pred_fallthru
      _
    // Predicated region
    $region26: #{tpu_custom_call.1} parent=1 // pred_check
      _
    $region27: #{tpu_custom_call.1} parent=1 // pred_check_branch
      %50 = sbr.rel (0) target = $region29
    $region28: #{tpu_custom_call.1} parent=1 // pred_region
      _
    $region29: #{tpu_custom_call.1} parent=1 // pred_fallthru
      _
    // Predicated region
    $region30: #{tpu_custom_call.1} parent=1 // pred_check
      _
    $region31: #{tpu_custom_call.1} parent=1 // pred_check_branch
      %52 = sbr.rel (0) target = $region33
    $region32: #{tpu_custom_call.1} parent=1 // pred_region
      %54 = dma.done [#allocation5], 16
    $region33: #{tpu_custom_call.1} parent=1 // pred_fallthru
      _
    // Predicated region
    $region34: #{tpu_custom_call.1} parent=1 // pred_check
      _
    $region35: #{tpu_custom_call.1} parent=1 // pred_check_branch
      %56 = sbr.rel (0) target = $region37
    $region36: #{tpu_custom_call.1} parent=1 // pred_region
      %58 = dma.done [#allocation7], 16
    $region37: #{tpu_custom_call.1} parent=1 // pred_fallthru
      _
    // Predicated region
    $region38: #{tpu_custom_call.1} parent=1 // pred_check
      _
    $region39: #{tpu_custom_call.1} parent=1 // pred_check_branch
      %60 = sbr.rel (0) target = $region41
    $region40: #{tpu_custom_call.1} parent=1 // pred_region
      %62 = dma.done [#allocation7], 16
    $region41: #{tpu_custom_call.1} parent=1 // pred_fallthru
      _
    %63 = sfence
    %v64 = vld [vmem:[%s4] sm:$0xff]
    %v65 = vld [vmem:[%s4 + $0x8] sm:$0xff]
    %v66 = vld [vmem:[%s5] sm:$0xff]
    %v67 = vld [vmem:[%s5 + $0x8] sm:$0xff]
    %vm68 = vcmask 130048
    %v70 = vsel %vm68, %v64, 0
    %v73 = vsel %vm68, %v65, 0
    %75 = vmatpush.msra.mxu0 0.0
    %76 = vmatpush.msra.mxu0 0.0
    %77 = vmatpush.msra.mxu0 0.0
    %78 = vmatpush.msra.mxu0 0.0
    %79 = vmatpush.msra.mxu0 0.0
    %80 = vmatpush.msra.mxu0 0.0
    %81 = vmatpush.msra.mxu0 0.0
    %82 = vmatpush.msra.mxu0 0.0
    %83 = vmatpush.msra.mxu0 0.0
    %84 = vmatpush.msra.mxu0 0.0
    %85 = vmatpush.msra.mxu0 0.0
    %86 = vmatpush.msra.mxu0 0.0
    %87 = vmatpush.msra.mxu0 0.0
    %88 = vmatpush.msra.mxu0 0.0
    %89 = vmatpush.msra.mxu0 %v67
    %90 = vmatpush.msra.mxu0 %v66
    %91 = vmatmul.f32.gmra.mxu0 %v70
    %v92 = vpop.f32.mrf.mxu0
    %v93 = vadd.f32 0.0, %v92
    %94 = vmatmul.f32.gmra.mxu0 %v73
    %v95 = vpop.f32.mrf.mxu0
    %v96 = vadd.f32 0.0, %v95
    %97 = vdwg.mxu0
    %s98 = sld [smem:[#allocation3]]
    %s99 = sld [smem:[#allocation3 + $0x1]]
    %s100 = sld [smem:[#allocation3 + $0x2]]
    %s101 = sld [smem:[#allocation3 + $0x3]]
    %s102 = sld [smem:[#allocation3 + $0x4]]
    %s103 = sld [smem:[#allocation3 + $0x5]]
    %s104 = sld [smem:[#allocation3 + $0x6]]
    %s105 = sld [smem:[#allocation3 + $0x7]]
    %s106 = sld [smem:[#allocation3 + $0x8]]
    %s107 = sld [smem:[#allocation3 + $0x9]]
    %s108 = sld [smem:[#allocation3 + $0xa]]
    %s109 = sld [smem:[#allocation3 + $0xb]]
    %s110 = sld [smem:[#allocation3 + $0xc]]
    %s111 = sld [smem:[#allocation3 + $0xd]]
    %s112 = sld [smem:[#allocation3 + $0xe]]
    %s113 = sld [smem:[#allocation3 + $0xf]]
    %s114 = sld [smem:[#allocation3 + $0x10]]
    %s115 = sld [smem:[#allocation3 + $0x11]]
    %s116 = sld [smem:[#allocation3 + $0x12]]
    %s117 = sld [smem:[#allocation3 + $0x13]]
    %s118 = sld [smem:[#allocation3 + $0x14]]
    %s119 = sld [smem:[#allocation3 + $0x15]]
    %s120 = sld [smem:[#allocation3 + $0x16]]
    %s121 = sld [smem:[#allocation3 + $0x17]]
    %s122 = sld [smem:[#allocation3 + $0x18]]
    %s123 = sld [smem:[#allocation3 + $0x19]]
    %s124 = sld [smem:[#allocation3 + $0x1a]]
    %s125 = sld [smem:[#allocation3 + $0x1b]]
    %s126 = sld [smem:[#allocation3 + $0x1c]]
    %s127 = sld [smem:[#allocation3 + $0x1d]]
    %s128 = sld [smem:[#allocation3 + $0x1e]]
    %s129 = sld [smem:[#allocation3 + $0x1f]]
    %s130 = sld [smem:[#allocation3 + $0x20]]
    %s131 = sld [smem:[#allocation3 + $0x21]]
    %s132 = sld [smem:[#allocation3 + $0x22]]
    %s133 = sld [smem:[#allocation3 + $0x23]]
    %s134 = sld [smem:[#allocation3 + $0x24]]
    %s135 = sld [smem:[#allocation3 + $0x25]]
    %s136 = sld [smem:[#allocation3 + $0x26]]
    %s137 = sld [smem:[#allocation3 + $0x27]]
    %s138 = sld [smem:[#allocation3 + $0x28]]
    %s139 = sld [smem:[#allocation3 + $0x29]]
    %s140 = sld [smem:[#allocation3 + $0x2a]]
    %s141 = sld [smem:[#allocation3 + $0x2b]]
    %s142 = sld [smem:[#allocation3 + $0x2c]]
    %s143 = sld [smem:[#allocation3 + $0x2d]]
    %s144 = sld [smem:[#allocation3 + $0x2e]]
    %s145 = sld [smem:[#allocation3 + $0x2f]]
    %s146 = sld [smem:[#allocation6]]
    %s147 = sld [smem:[#allocation6 + $0x1]]
    %s148 = sld [smem:[#allocation6 + $0x2]]
    %s149 = sld [smem:[#allocation6 + $0x3]]
    %s150 = sld [smem:[#allocation6 + $0x4]]
    %s151 = sld [smem:[#allocation6 + $0x5]]
    %s152 = sld [smem:[#allocation6 + $0x6]]
    %s153 = sld [smem:[#allocation6 + $0x7]]
    %s154 = sld [smem:[#allocation8]]
    %s155 = sld [smem:[#allocation8 + $0x1]]
    %s156 = sld [smem:[#allocation8 + $0x2]]
    %s157 = sld [smem:[#allocation8 + $0x3]]
    %s158 = sld [smem:[#allocation8 + $0x4]]
    %s159 = sld [smem:[#allocation8 + $0x5]]
    %s160 = sld [smem:[#allocation8 + $0x6]]
    %s161 = sld [smem:[#allocation8 + $0x7]]
    %s162 = sld [smem:[#allocation8 + $0x8]]
    %s163 = sld [smem:[#allocation8 + $0x9]]
    %s164 = sld [smem:[#allocation8 + $0xa]]
    %s165 = sld [smem:[#allocation8 + $0xb]]
    %s166 = sld [smem:[#allocation8 + $0xc]]
    %s167 = sld [smem:[#allocation8 + $0xd]]
    %s168 = sld [smem:[#allocation8 + $0xe]]
    %s169 = sld [smem:[#allocation8 + $0xf]]
    %s170 = sld [smem:[#allocation8 + $0x10]]
    %s171 = sld [smem:[#allocation8 + $0x11]]
    %s172 = sld [smem:[#allocation8 + $0x12]]
    %s173 = sld [smem:[#allocation8 + $0x13]]
    %s174 = sld [smem:[#allocation8 + $0x14]]
    %s175 = sld [smem:[#allocation8 + $0x15]]
    %s176 = sld [smem:[#allocation8 + $0x16]]
    %s177 = sld [smem:[#allocation8 + $0x17]]
    %v178 = vstv %s98
    %v179 = vmul.f32 %v178, %v93
    %v180 = vstv %s99
    %v181 = vmul.f32 %v180, %v64
    %v182 = vadd.f32 %v179, %v181
    %v183 = vstv %s100
    %v184 = vmul.f32 %v183, %v93
    %186 = vrot.lane.b32.xlu0 %v184, 112
    %v187 = vpop.permute.xlu0 %186
    %v189 = vadd.f32 %v182, %v187
    %v190 = vstv %s101
    %v191 = vmul.f32 %v190, %v96
    %v192 = vadd.f32 %v189, %v191
    %v193 = vstv %s102
    %v194 = vmul.f32 %v193, %v65
    %v195 = vadd.f32 %v192, %v194
    %v196 = vstv %s103
    %v197 = vmul.f32 %v196, %v96
    %199 = vrot.lane.b32.xlu0 %v197, 112
    %v200 = vpop.permute.xlu0 %199
    %v202 = vadd.f32 %v195, %v200
    %v203 = vstv %s146
    %v204 = vadd.f32 %v202, %v203
    %vm205 = vcmp.gt.f32.partialorder %v204, 0.0
    %v206 = vmul.f32 %v204, 0.1
    %v207 = vsel %vm205, %v204, %v206
    %v208 = vstv %s154
    %v209 = vmul.f32 %v208, %v207
    %v210 = vadd.f32 %v209, 0.0
    %v211 = vstv %s155
    %v212 = vmul.f32 %v211, %v207
    %v213 = vadd.f32 %v212, 0.0
    %v214 = vstv %s156
    %v215 = vmul.f32 %v214, %v207
    %v216 = vadd.f32 %v215, 0.0
    %v217 = vstv %s104
    %v218 = vmul.f32 %v217, %v93
    %v219 = vstv %s105
    %v220 = vmul.f32 %v219, %v64
    %v221 = vadd.f32 %v218, %v220
    %v222 = vstv %s106
    %v223 = vmul.f32 %v222, %v93
    %225 = vrot.lane.b32.xlu0 %v223, 112
    %v226 = vpop.permute.xlu0 %225
    %v228 = vadd.f32 %v221, %v226
    %v229 = vstv %s107
    %v230 = vmul.f32 %v229, %v96
    %v231 = vadd.f32 %v228, %v230
    %v232 = vstv %s108
    %v233 = vmul.f32 %v232, %v65
    %v234 = vadd.f32 %v231, %v233
    %v235 = vstv %s109
    %v236 = vmul.f32 %v235, %v96
    %238 = vrot.lane.b32.xlu0 %v236, 112
    %v239 = vpop.permute.xlu0 %238
    %v241 = vadd.f32 %v234, %v239
    %v242 = vstv %s147
    %v243 = vadd.f32 %v241, %v242
    %vm244 = vcmp.gt.f32.partialorder %v243, 0.0
    %v245 = vmul.f32 %v243, 0.1
    %v246 = vsel %vm244, %v243, %v245
    %v247 = vstv %s157
    %v248 = vmul.f32 %v247, %v246
    %v249 = vadd.f32 %v210, %v248
    %v250 = vstv %s158
    %v251 = vmul.f32 %v250, %v246
    %v252 = vadd.f32 %v213, %v251
    %v253 = vstv %s159
    %v254 = vmul.f32 %v253, %v246
    %v255 = vadd.f32 %v216, %v254
    %v256 = vstv %s110
    %v257 = vmul.f32 %v256, %v93
    %v258 = vstv %s111
    %v259 = vmul.f32 %v258, %v64
    %v260 = vadd.f32 %v257, %v259
    %v261 = vstv %s112
    %v262 = vmul.f32 %v261, %v93
    %264 = vrot.lane.b32.xlu0 %v262, 112
    %v265 = vpop.permute.xlu0 %264
    %v267 = vadd.f32 %v260, %v265
    %v268 = vstv %s113
    %v269 = vmul.f32 %v268, %v96
    %v270 = vadd.f32 %v267, %v269
    %v271 = vstv %s114
    %v272 = vmul.f32 %v271, %v65
    %v273 = vadd.f32 %v270, %v272
    %v274 = vstv %s115
    %v275 = vmul.f32 %v274, %v96
    %277 = vrot.lane.b32.xlu0 %v275, 112
    %v278 = vpop.permute.xlu0 %277
    %v280 = vadd.f32 %v273, %v278
    %v281 = vstv %s148
    %v282 = vadd.f32 %v280, %v281
    %vm283 = vcmp.gt.f32.partialorder %v282, 0.0
    %v284 = vmul.f32 %v282, 0.1
    %v285 = vsel %vm283, %v282, %v284
    %v286 = vstv %s160
    %v287 = vmul.f32 %v286, %v285
    %v288 = vadd.f32 %v249, %v287
    %v289 = vstv %s161
    %v290 = vmul.f32 %v289, %v285
    %v291 = vadd.f32 %v252, %v290
    %v292 = vstv %s162
    %v293 = vmul.f32 %v292, %v285
    %v294 = vadd.f32 %v255, %v293
    %v295 = vstv %s116
    %v296 = vmul.f32 %v295, %v93
    %v297 = vstv %s117
    %v298 = vmul.f32 %v297, %v64
    %v299 = vadd.f32 %v296, %v298
    %v300 = vstv %s118
    %v301 = vmul.f32 %v300, %v93
    %303 = vrot.lane.b32.xlu0 %v301, 112
    %v304 = vpop.permute.xlu0 %303
    %v306 = vadd.f32 %v299, %v304
    %v307 = vstv %s119
    %v308 = vmul.f32 %v307, %v96
    %v309 = vadd.f32 %v306, %v308
    %v310 = vstv %s120
    %v311 = vmul.f32 %v310, %v65
    %v312 = vadd.f32 %v309, %v311
    %v313 = vstv %s121
    %v314 = vmul.f32 %v313, %v96
    %316 = vrot.lane.b32.xlu0 %v314, 112
    %v317 = vpop.permute.xlu0 %316
    %v319 = vadd.f32 %v312, %v317
    %v320 = vstv %s149
    %v321 = vadd.f32 %v319, %v320
    %vm322 = vcmp.gt.f32.partialorder %v321, 0.0
    %v323 = vmul.f32 %v321, 0.1
    %v324 = vsel %vm322, %v321, %v323
    %v325 = vstv %s163
    %v326 = vmul.f32 %v325, %v324
    %v327 = vadd.f32 %v288, %v326
    %v328 = vstv %s164
    %v329 = vmul.f32 %v328, %v324
    %v330 = vadd.f32 %v291, %v329
    %v331 = vstv %s165
    %v332 = vmul.f32 %v331, %v324
    %v333 = vadd.f32 %v294, %v332
    %v334 = vstv %s122
    %v335 = vmul.f32 %v334, %v93
    %v336 = vstv %s123
    %v337 = vmul.f32 %v336, %v64
    %v338 = vadd.f32 %v335, %v337
    %v339 = vstv %s124
    %v340 = vmul.f32 %v339, %v93
    %342 = vrot.lane.b32.xlu0 %v340, 112
    %v343 = vpop.permute.xlu0 %342
    %v345 = vadd.f32 %v338, %v343
    %v346 = vstv %s125
    %v347 = vmul.f32 %v346, %v96
    %v348 = vadd.f32 %v345, %v347
    %v349 = vstv %s126
    %v350 = vmul.f32 %v349, %v65
    %v351 = vadd.f32 %v348, %v350
    %v352 = vstv %s127
    %v353 = vmul.f32 %v352, %v96
    %355 = vrot.lane.b32.xlu0 %v353, 112
    %v356 = vpop.permute.xlu0 %355
    %v358 = vadd.f32 %v351, %v356
    %v359 = vstv %s150
    %v360 = vadd.f32 %v358, %v359
    %vm361 = vcmp.gt.f32.partialorder %v360, 0.0
    %v362 = vmul.f32 %v360, 0.1
    %v363 = vsel %vm361, %v360, %v362
    %v364 = vstv %s166
    %v365 = vmul.f32 %v364, %v363
    %v366 = vadd.f32 %v327, %v365
    %v367 = vstv %s167
    %v368 = vmul.f32 %v367, %v363
    %v369 = vadd.f32 %v330, %v368
    %v370 = vstv %s168
    %v371 = vmul.f32 %v370, %v363
    %v372 = vadd.f32 %v333, %v371
    %v373 = vstv %s128
    %v374 = vmul.f32 %v373, %v93
    %v375 = vstv %s129
    %v376 = vmul.f32 %v375, %v64
    %v377 = vadd.f32 %v374, %v376
    %v378 = vstv %s130
    %v379 = vmul.f32 %v378, %v93
    %381 = vrot.lane.b32.xlu0 %v379, 112
    %v382 = vpop.permute.xlu0 %381
    %v384 = vadd.f32 %v377, %v382
    %v385 = vstv %s131
    %v386 = vmul.f32 %v385, %v96
    %v387 = vadd.f32 %v384, %v386
    %v388 = vstv %s132
    %v389 = vmul.f32 %v388, %v65
    %v390 = vadd.f32 %v387, %v389
    %v391 = vstv %s133
    %v392 = vmul.f32 %v391, %v96
    %394 = vrot.lane.b32.xlu0 %v392, 112
    %v395 = vpop.permute.xlu0 %394
    %v397 = vadd.f32 %v390, %v395
    %v398 = vstv %s151
    %v399 = vadd.f32 %v397, %v398
    %vm400 = vcmp.gt.f32.partialorder %v399, 0.0
    %v401 = vmul.f32 %v399, 0.1
    %v402 = vsel %vm400, %v399, %v401
    %v403 = vstv %s169
    %v404 = vmul.f32 %v403, %v402
    %v405 = vadd.f32 %v366, %v404
    %v406 = vstv %s170
    %v407 = vmul.f32 %v406, %v402
    %v408 = vadd.f32 %v369, %v407
    %v409 = vstv %s171
    %v410 = vmul.f32 %v409, %v402
    %v411 = vadd.f32 %v372, %v410
    %v412 = vstv %s134
    %v413 = vmul.f32 %v412, %v93
    %v414 = vstv %s135
    %v415 = vmul.f32 %v414, %v64
    %v416 = vadd.f32 %v413, %v415
    %v417 = vstv %s136
    %v418 = vmul.f32 %v417, %v93
    %420 = vrot.lane.b32.xlu0 %v418, 112
    %v421 = vpop.permute.xlu0 %420
    %v423 = vadd.f32 %v416, %v421
    %v424 = vstv %s137
    %v425 = vmul.f32 %v424, %v96
    %v426 = vadd.f32 %v423, %v425
    %v427 = vstv %s138
    %v428 = vmul.f32 %v427, %v65
    %v429 = vadd.f32 %v426, %v428
    %v430 = vstv %s139
    %v431 = vmul.f32 %v430, %v96
    %433 = vrot.lane.b32.xlu0 %v431, 112
    %v434 = vpop.permute.xlu0 %433
    %v436 = vadd.f32 %v429, %v434
    %v437 = vstv %s152
    %v438 = vadd.f32 %v436, %v437
    %vm439 = vcmp.gt.f32.partialorder %v438, 0.0
    %v440 = vmul.f32 %v438, 0.1
    %v441 = vsel %vm439, %v438, %v440
    %v442 = vstv %s172
    %v443 = vmul.f32 %v442, %v441
    %v444 = vadd.f32 %v405, %v443
    %v445 = vstv %s173
    %v446 = vmul.f32 %v445, %v441
    %v447 = vadd.f32 %v408, %v446
    %v448 = vstv %s174
    %v449 = vmul.f32 %v448, %v441
    %v450 = vadd.f32 %v411, %v449
    %v451 = vstv %s140
    %v452 = vmul.f32 %v451, %v93
    %v453 = vstv %s141
    %v454 = vmul.f32 %v453, %v64
    %v455 = vadd.f32 %v452, %v454
    %v456 = vstv %s142
    %v457 = vmul.f32 %v456, %v93
    %459 = vrot.lane.b32.xlu0 %v457, 112
    %v460 = vpop.permute.xlu0 %459
    %v462 = vadd.f32 %v455, %v460
    %v463 = vstv %s143
    %v464 = vmul.f32 %v463, %v96
    %v465 = vadd.f32 %v462, %v464
    %v466 = vstv %s144
    %v467 = vmul.f32 %v466, %v65
    %v468 = vadd.f32 %v465, %v467
    %v469 = vstv %s145
    %v470 = vmul.f32 %v469, %v96
    %472 = vrot.lane.b32.xlu0 %v470, 112
    %v473 = vpop.permute.xlu0 %472
    %v475 = vadd.f32 %v468, %v473
    %v476 = vstv %s153
    %v477 = vadd.f32 %v475, %v476
    %vm478 = vcmp.gt.f32.partialorder %v477, 0.0
    %v479 = vmul.f32 %v477, 0.1
    %v480 = vsel %vm478, %v477, %v479
    %v481 = vstv %s175
    %v482 = vmul.f32 %v481, %v480
    %v483 = vadd.f32 %v444, %v482
    %v484 = vstv %s176
    %v485 = vmul.f32 %v484, %v480
    %v486 = vadd.f32 %v447, %v485
    %v487 = vstv %s177
    %v488 = vmul.f32 %v487, %v480
    %v489 = vadd.f32 %v450, %v488
    %v491 = vsel %vm68, %v483, 0
    %v494 = vsel %vm68, %v489, 0
    %496 = vmatpush.msra.mxu0 0.0
    %497 = vmatpush.msra.mxu0 0.0
    %498 = vmatpush.msra.mxu0 0.0
    %499 = vmatpush.msra.mxu0 0.0
    %500 = vmatpush.msra.mxu0 0.0
    %501 = vmatpush.msra.mxu0 0.0
    %502 = vmatpush.msra.mxu0 0.0
    %503 = vmatpush.msra.mxu0 0.0
    %504 = vmatpush.msra.mxu0 0.0
    %505 = vmatpush.msra.mxu0 0.0
    %506 = vmatpush.msra.mxu0 0.0
    %507 = vmatpush.msra.mxu0 0.0
    %508 = vmatpush.msra.mxu0 0.0
    %509 = vmatpush.msra.mxu0 0.0
    %510 = vmatpush.msra.mxu0 %v67
    %511 = vmatpush.msra.mxu0 %v66
    %512 = vmatmul.f32.gmra.mxu0 %v491
    %v513 = vpop.f32.mrf.mxu0
    %v514 = vadd.f32 0.0, %v513
    %515 = vmatmul.f32.gmra.mxu0 %v494
    %v516 = vpop.f32.mrf.mxu0
    %v517 = vadd.f32 0.0, %v516
    %518 = vdwg.mxu0
    %v519 = vadd.f32 %v514, %v486
    %521 = vrot.lane.b32.xlu0 %v517, 112
    %v522 = vpop.permute.xlu0 %521
    %v524 = vadd.f32 %v519, %v522
    %s525 = sld [smem:[#allocation2]]
    %v526 = vstv %s525
    %v527 = vadd.f32 %v524, %v526
    %vm528 = vcmp.gt.f32.partialorder %v527, 0.0
    %v529 = vmul.f32 %v527, 0.1
    %v530 = vsel %vm528, %v527, %v529
    %v531 = vld [vmem:[%s6] sm:$0xff]
    %v532 = vld [vmem:[%s6 + $0x8] sm:$0xff]
    %v533 = vld [vmem:[%s6 + $0x10] sm:$0x1]
    %v534 = vperm.slane %v533, 0
    %v536 = vsel %vm68, %v530, 0
    %538 = vmatpush.msra.mxu0 0.0
    %539 = vmatpush.msra.mxu0 0.0
    %540 = vmatpush.msra.mxu0 0.0
    %541 = vmatpush.msra.mxu0 0.0
    %542 = vmatpush.msra.mxu0 0.0
    %543 = vmatpush.msra.mxu0 0.0
    %544 = vmatpush.msra.mxu0 0.0
    %545 = vmatpush.msra.mxu0 0.0
    %546 = vmatpush.msra.mxu0 0.0
    %547 = vmatpush.msra.mxu0 0.0
    %548 = vmatpush.msra.mxu0 0.0
    %549 = vmatpush.msra.mxu0 0.0
    %550 = vmatpush.msra.mxu0 0.0
    %551 = vmatpush.msra.mxu0 0.0
    %552 = vmatpush.msra.mxu0 %v532
    %553 = vmatpush.msra.mxu0 %v531
    %554 = vmatmul.f32.gmra.mxu0 %v536
    %v555 = vpop.f32.mrf.mxu0
    %v556 = vadd.f32 %v534, %v555
    %557 = vdwg.mxu0
    %vm558 = vcmask 64512
    %559 = vst.msk [vmem:[#allocation9] sm:$0xff] %vm558, %v556
    // Predicated region
    $region42: #{tpu_custom_call.1} parent=1 // pred_check
      _
    $region43: #{tpu_custom_call.1} parent=1 // pred_check_branch
      %561 = sbr.rel (0) target = $region45
    $region44: #{tpu_custom_call.1} parent=1 // pred_region
      %563 = vsyncadd [#allocation4], 0
      %s565 = sshll.u32 [#allocation9], 4
      %s566 = int_to_ptr.vmem [resolvable:$true] %s565
      %s567 = sshll.u32 %s7, 4
      %s568 = int_to_ptr.hbm [resolvable:$true] %s567
      %570 = dma.vmem_to_hbm [thread:$0]  %s566, 128, %s568, [#allocation4]
    $region45: #{tpu_custom_call.1} parent=1 // pred_fallthru
      _
    // Predicated region
    $region46: #{tpu_custom_call.1} parent=1 // pred_check
      _
    $region47: #{tpu_custom_call.1} parent=1 // pred_check_branch
      %572 = sbr.rel (0) target = $region49
    $region48: #{tpu_custom_call.1} parent=1 // pred_region
      %574 = dma.done [#allocation4], 128
    $region49: #{tpu_custom_call.1} parent=1 // pred_fallthru
      _
    %575 = vsyncpa [#allocation4], 1
    %576 = vsyncpa [#allocation5], 1
    %577 = vsyncpa [#allocation7], 1

</llo_original>
